<compile_context>
chip_gen: v7x
topology: tpu7x:2x2x1
jax: 0.10.0
libtpu: 0.0.40
codegen_flags: <defaults>
</compile_context>

<pallas_src>
import functools

import jax
import jax.numpy as jnp
from jax import lax
from jax.experimental import pallas as pl
from jax.experimental.pallas import tpu as pltpu

LANES = 128


def _round_up(x, m):
    return (x + m - 1) // m * m


def _default_tiles():
    """(q_tile, kv_tile): 128 q rows matches v5e's 4x128^2 MXU; 256 fills v6e/v7x."""
    try:
        kind = jax.devices()[0].device_kind.lower()
    except Exception:
        return 256, 256
    if "v5e" in kind or "v5 lite" in kind or "v5litepod" in kind:
        return 128, 256
    return 256, 256


def _vmem_limit_bytes():
    """~75% of this generation's VMEM (96 MiB on v5e/v6e, 48 MiB on v7x)."""
    try:
        cap = int(pltpu.get_tpu_info().vmem_capacity_bytes)
    except Exception:
        cap = 64 << 20  # conservative (v7x per-core) fallback
    return cap * 3 // 4


# Single-buffer blocks whose index_map is constant across the grid (pure VMEM saving).
_SINGLE_BUFFER = {"pipeline_mode": pl.Buffered(1)} if hasattr(pl, "Buffered") else {}


def _qkv_proj_kernel(x_ref, w_ref, b_ref, q_ref, k_ref, v_ref, *, dkp, matmul_dtype):
    # x_ref: (tr, dim) rows; w_ref: (dim, 2*dkp+dvp) fused [Wq*scale|Wk|Wv] (padded,
    # already in matmul dtype); b_ref: (1, 2*dkp+dvp) fused bias in f32.
    xm = x_ref[...]
    if matmul_dtype is not None:
        xm = xm.astype(matmul_dtype)
    # One fused, lane-dense projection matmul with f32 accumulation; bias added in f32.
    qkv = jnp.dot(xm, w_ref[...], preferred_element_type=jnp.float32) + b_ref[...]
    q_ref[...] = qkv[:, :dkp].astype(q_ref.dtype)
    k_ref[...] = qkv[:, dkp:2 * dkp].astype(k_ref.dtype)
    v_ref[...] = qkv[:, 2 * dkp:].astype(v_ref.dtype)


def _flash_attn_kernel(q_ref, k_ref, v_ref, o_ref, m_sc, l_sc, acc_sc, *,
                       tkv, n_valid, mask_kv):
    # Grid: (B, q tiles, kv tiles); kv axis is last and "arbitrary" (online softmax).
    ki = pl.program_id(2)

    @pl.when(ki == 0)
    def _():
        m_sc[...] = jnp.full(m_sc.shape, -jnp.inf, jnp.float32)
        l_sc[...] = jnp.zeros(l_sc.shape, jnp.float32)
        acc_sc[...] = jnp.zeros(acc_sc.shape, jnp.float32)

    q = q_ref[0]                      # (tq, dkp), scale already folded into Wq/bq
    k = k_ref[0]                      # (tkv, dkp)
    # scores = q @ k^T : contract last axes of both operands (no XLU transpose).
    s = lax.dot_general(q, k, (((1,), (1,)), ((), ())),
                        preferred_element_type=jnp.float32)       # (tq, tkv)
    if mask_kv:
        col = ki * tkv + lax.broadcasted_iota(jnp.int32, s.shape, 1)
        s = jnp.where(col < n_valid, s, -1e30)

    m_prev = m_sc[...]
    m_new = jnp.maximum(m_prev, jnp.max(s, axis=-1, keepdims=True))
    alpha = jnp.exp(m_prev - m_new)
    p = jnp.exp(s - m_new)            # unnormalized probabilities, f32
    l_sc[...] = alpha * l_sc[...] + jnp.sum(p, axis=-1, keepdims=True)
    acc_sc[...] = alpha * acc_sc[...] + jnp.dot(
        p.astype(v_ref.dtype), v_ref[0], preferred_element_type=jnp.float32)
    m_sc[...] = m_new

    @pl.when(ki == pl.num_programs(2) - 1)
    def _():
        # Deferred normalization on (tq, dvp): EUP reciprocal + one Newton step.
        l = l_sc[...]
        r = pl.reciprocal(l, approx=True)
        r = r * (2.0 - l * r)
        o_ref[0] = (acc_sc[...] * r).astype(o_ref.dtype)


def self_attention(x, wq, wk, wv, bq, bk, bv, *, dk, q_tile=None, kv_tile=None,
                   matmul_dtype=jnp.bfloat16):
    """x: (B, N, dim); weights (dim, dk/dv); biases (1, dk/dv). Returns (B, N, dv)."""
    B, N, dim = x.shape
    dv = wv.shape[1]
    scale = float(dk) ** (-0.5)

    dkp = _round_up(dk, LANES)
    dvp = _round_up(dv, LANES)
    wtot = 2 * dkp + dvp

    dq_tile, dkv_tile = _default_tiles()
    q_tile = q_tile or dq_tile
    kv_tile = kv_tile or dkv_tile

    # Clamp tiles for short sequences; pad N so the grid covers it (masked in-kernel).
    tq = min(q_tile, _round_up(N, 8))
    tkv = min(kv_tile, _round_up(N, 8))
    if max(tq, tkv) % min(tq, tkv) != 0:
        tkv = tq
    n_pad = _round_up(N, max(tq, tkv))

    def pad_cols(a, width):
        return jnp.pad(a, ((0, 0), (0, width - a.shape[1])))

    # Fold 1/sqrt(dk) into the q projection; fuse + zero-pad to 128-lane sections.
    w_fused = jnp.concatenate(
        [pad_cols(wq * scale, dkp), pad_cols(wk, dkp), pad_cols(wv, dvp)], axis=1)
    b_fused = jnp.concatenate(
        [pad_cols(bq * scale, dkp), pad_cols(bk, dkp), pad_cols(bv, dvp)], axis=1)
    if matmul_dtype is not None:
        w_fused = w_fused.astype(matmul_dtype)        # one-time wrapper cast
    store_dtype = matmul_dtype if matmul_dtype is not None else x.dtype

    x_p = x if n_pad == N else jnp.pad(x, ((0, 0), (0, n_pad - N), (0, 0)))
    x_rows = x_p.reshape(B * n_pad, dim)

    vmem_limit = _vmem_limit_bytes()

    # ---------------- projection kernel: q/k/v computed exactly once ----------------
    tr = tq
    n_rows = B * n_pad
    q, k, v = pl.pallas_call(
        functools.partial(_qkv_proj_kernel, dkp=dkp, matmul_dtype=matmul_dtype),
        out_shape=(jax.ShapeDtypeStruct((n_rows, dkp), store_dtype),
                   jax.ShapeDtypeStruct((n_rows, dkp), store_dtype),
                   jax.ShapeDtypeStruct((n_rows, dvp), store_dtype)),
        grid_spec=pltpu.PrefetchScalarGridSpec(
            num_scalar_prefetch=0,
            grid=(n_rows // tr,),
            in_specs=[
                pl.BlockSpec((tr, dim), lambda r: (r, 0)),
                pl.BlockSpec((dim, wtot), lambda r: (0, 0), **_SINGLE_BUFFER),
                pl.BlockSpec((1, wtot), lambda r: (0, 0), **_SINGLE_BUFFER),
            ],
            out_specs=[
                pl.BlockSpec((tr, dkp), lambda r: (r, 0)),
                pl.BlockSpec((tr, dkp), lambda r: (r, 0)),
                pl.BlockSpec((tr, dvp), lambda r: (r, 0)),
            ]),
        compiler_params=pltpu.CompilerParams(
            dimension_semantics=("parallel",),
            vmem_limit_bytes=vmem_limit),
    )(x_rows, w_fused, b_fused)

    q = q.reshape(B, n_pad, dkp)
    k = k.reshape(B, n_pad, dkp)
    v = v.reshape(B, n_pad, dvp)

    # ---------------- flash attention kernel: bounded VMEM, online softmax ----------
    nq = n_pad // tq
    nkv = n_pad // tkv
    out = pl.pallas_call(
        functools.partial(_flash_attn_kernel, tkv=tkv, n_valid=N,
                          mask_kv=(n_pad != N)),
        out_shape=jax.ShapeDtypeStruct((B, n_pad, dvp), x.dtype),
        grid_spec=pltpu.PrefetchScalarGridSpec(
            num_scalar_prefetch=0,
            grid=(B, nq, nkv),
            in_specs=[
                pl.BlockSpec((1, tq, dkp), lambda b, qi, ki: (b, qi, 0)),
                pl.BlockSpec((1, tkv, dkp), lambda b, qi, ki: (b, ki, 0)),
                pl.BlockSpec((1, tkv, dvp), lambda b, qi, ki: (b, ki, 0)),
            ],
            out_specs=pl.BlockSpec((1, tq, dvp), lambda b, qi, ki: (b, qi, 0)),
            scratch_shapes=[
                pltpu.VMEM((tq, 1), jnp.float32),     # running max m
                pltpu.VMEM((tq, 1), jnp.float32),     # running denom l
                pltpu.VMEM((tq, dvp), jnp.float32),   # unnormalized output acc
            ]),
        compiler_params=pltpu.CompilerParams(
            dimension_semantics=("parallel", "parallel", "arbitrary"),
            vmem_limit_bytes=vmem_limit),
    )(q, k, v)

    # Skip the extra HBM pass when nothing was padded; otherwise drop zero padding.
    if n_pad == N and dvp == dv:
        return out
    return out[:, :N, :dv]


def _reference(x, wq, wk, wv, bq, bk, bv, dk):
    q = x @ wq + bq
    k = x @ wk + bk
    v = x @ wv + bv
    attn = (q @ jnp.swapaxes(k, -2, -1)) * (float(dk) ** (-0.5))
    attn = jax.nn.softmax(attn, axis=-1)
    return attn @ v


if __name__ == "__main__":
    key = jax.random.PRNGKey(0)

    def linear_init(kw, kb, fan_in, fan_out):
        bound = 1.0 / (fan_in ** 0.5)
        w = jax.random.uniform(kw, (fan_in, fan_out), minval=-bound, maxval=bound,
                               dtype=jnp.float32)
        b = jax.random.uniform(kb, (1, fan_out), minval=-bound, maxval=bound,
                               dtype=jnp.float32)
        return w, b

    def run_case(case_key, B, N, dim, dk, dv):
        kx, kq, kk, kv_, kbq, kbk, kbv = jax.random.split(case_key, 7)
        x = jax.random.uniform(kx, (B, N, dim), dtype=jnp.float32)
        wq, bq = linear_init(kq, kbq, dim, dk)
        wk, bk = linear_init(kk, kbk, dim, dk)
        wv, bv = linear_init(kv_, kbv, dim, dv)
        ref = _reference(x, wq, wk, wv, bq, bk, bv, dk)

        # Pure-f32 MXU operands: tight check against the reference.
        out_f32 = jax.block_until_ready(
            self_attention(x, wq, wk, wv, bq, bk, bv, dk=dk, matmul_dtype=None))
        assert out_f32.shape == (B, N, dv)
        assert jnp.allclose(out_f32, ref, atol=1e-4, rtol=1e-4), "f32 mismatch vs reference"

        # Default bf16 MXU operands (f32 accumulate / f32 softmax): looser tolerance.
        out_bf16 = jax.block_until_ready(
            self_attention(x, wq, wk, wv, bq, bk, bv, dk=dk))
        assert out_bf16.shape == (B, N, dv)
        assert jnp.allclose(out_bf16, ref, atol=3e-2, rtol=3e-2), "bf16 mismatch vs reference"

    k1, k2 = jax.random.split(key)
    run_case(k1, B=2, N=8, dim=16, dk=32, dv=32)   # aligned rows, no sequence padding
    run_case(k2, B=1, N=5, dim=3, dk=4, dv=6)      # original module shapes; exercises kv mask

    print("KERNEL_OK")
</pallas_src>

<mosaic_0001>
module attributes {stable_mosaic.version = 11 : i64} {
  func.func @_qkv_proj_kernel(%arg0: i32, %arg1: memref<8x16xf32, #tpu.memory_space<vmem>>, %arg2: memref<16x384xf32, #tpu.memory_space<vmem>>, %arg3: memref<1x384xf32, #tpu.memory_space<vmem>>, %arg4: memref<8x128xf32, #tpu.memory_space<vmem>>, %arg5: memref<8x128xf32, #tpu.memory_space<vmem>>, %arg6: memref<8x128xf32, #tpu.memory_space<vmem>>) attributes {dimension_semantics = [#tpu.dimension_semantics<parallel>], iteration_bounds = array<i64: 2>, scalar_prefetch = 0 : i64, scratch_operands = 0 : i64, tpu.core_type = #tpu.core_type<tc>, window_params = [{transform_indices = @transform_0, window_bounds = array<i64: 8, 16>}, {pipeline_mode = #tpu.pipeline_mode<synchronous>, transform_indices = @transform_1, window_bounds = array<i64: 16, 384>}, {pipeline_mode = #tpu.pipeline_mode<synchronous>, transform_indices = @transform_2, window_bounds = array<i64: 1, 384>}, {transform_indices = @transform_3, window_bounds = array<i64: 8, 128>}, {transform_indices = @transform_4, window_bounds = array<i64: 8, 128>}, {transform_indices = @transform_5, window_bounds = array<i64: 8, 128>}]} {
    %c0 = arith.constant 0 : index
    %c0_0 = arith.constant 0 : index
    %0 = vector.load %arg1[%c0, %c0_0] : memref<8x16xf32, #tpu.memory_space<vmem>>, vector<8x16xf32>
    %c0_1 = arith.constant 0 : index
    %c0_2 = arith.constant 0 : index
    %1 = vector.load %arg2[%c0_1, %c0_2] : memref<16x384xf32, #tpu.memory_space<vmem>>, vector<16x384xf32>
    %cst = arith.constant dense<0.000000e+00> : vector<8x384xf32>
    %2 = tpu.matmul %0, %1, %cst {dimension_numbers = #tpu.dot_dimension_numbers<[1], [0], [0], [1], [0, 0, 1, 1], [], []>} : vector<8x16xf32>, vector<16x384xf32>, vector<8x384xf32> -> vector<8x384xf32>
    %c0_3 = arith.constant 0 : index
    %c0_4 = arith.constant 0 : index
    %3 = vector.load %arg3[%c0_3, %c0_4] : memref<1x384xf32, #tpu.memory_space<vmem>>, vector<1x384xf32>
    %4 = vector.broadcast %3 : vector<1x384xf32> to vector<8x384xf32>
    %5 = arith.addf %2, %4 : vector<8x384xf32>
    %6 = vector.extract_strided_slice %5 {offsets = [0, 0], sizes = [8, 128], strides = [1, 1]} : vector<8x384xf32> to vector<8x128xf32>
    %c0_5 = arith.constant 0 : index
    %c0_6 = arith.constant 0 : index
    %7 = vector.load %arg4[%c0_5, %c0_6] : memref<8x128xf32, #tpu.memory_space<vmem>>, vector<8x128xf32>
    tpu.vector_store %arg4[%c0_5, %c0_6], %6 {strides = array<i32>} : memref<8x128xf32, #tpu.memory_space<vmem>>, vector<8x128xf32>,
    %8 = vector.extract_strided_slice %5 {offsets = [0, 128], sizes = [8, 128], strides = [1, 1]} : vector<8x384xf32> to vector<8x128xf32>
    %c0_7 = arith.constant 0 : index
    %c0_8 = arith.constant 0 : index
    %9 = vector.load %arg5[%c0_7, %c0_8] : memref<8x128xf32, #tpu.memory_space<vmem>>, vector<8x128xf32>
    tpu.vector_store %arg5[%c0_7, %c0_8], %8 {strides = array<i32>} : memref<8x128xf32, #tpu.memory_space<vmem>>, vector<8x128xf32>,
    %10 = vector.extract_strided_slice %5 {offsets = [0, 256], sizes = [8, 128], strides = [1, 1]} : vector<8x384xf32> to vector<8x128xf32>
    %c0_9 = arith.constant 0 : index
    %c0_10 = arith.constant 0 : index
    %11 = vector.load %arg6[%c0_9, %c0_10] : memref<8x128xf32, #tpu.memory_space<vmem>>, vector<8x128xf32>
    tpu.vector_store %arg6[%c0_9, %c0_10], %10 {strides = array<i32>} : memref<8x128xf32, #tpu.memory_space<vmem>>, vector<8x128xf32>,
    return
  }
  func.func @transform_0(%arg0: i32) -> (i32, i32) {
    %c0_i32 = arith.constant 0 : i32
    %c0_i32_0 = arith.constant 0 : i32
    return %arg0, %c0_i32 : i32, i32
  }
  func.func @transform_1(%arg0: i32) -> (i32, i32) {
    %c0_i32 = arith.constant 0 : i32
    %c0_i32_0 = arith.constant 0 : i32
    %c0_i32_1 = arith.constant 0 : i32
    return %c0_i32, %c0_i32_0 : i32, i32
  }
  func.func @transform_2(%arg0: i32) -> (i32, i32) {
    %c0_i32 = arith.constant 0 : i32
    %c0_i32_0 = arith.constant 0 : i32
    %c0_i32_1 = arith.constant 0 : i32
    return %c0_i32, %c0_i32_0 : i32, i32
  }
  func.func @transform_3(%arg0: i32) -> (i32, i32) {
    %c0_i32 = arith.constant 0 : i32
    %c0_i32_0 = arith.constant 0 : i32
    return %arg0, %c0_i32 : i32, i32
  }
  func.func @transform_4(%arg0: i32) -> (i32, i32) {
    %c0_i32 = arith.constant 0 : i32
    %c0_i32_0 = arith.constant 0 : i32
    return %arg0, %c0_i32 : i32, i32
  }
  func.func @transform_5(%arg0: i32) -> (i32, i32) {
    %c0_i32 = arith.constant 0 : i32
    %c0_i32_0 = arith.constant 0 : i32
    return %arg0, %c0_i32 : i32, i32
  }
}

</mosaic_0001>

<llo_original>
// kernel: tpu_custom_call.1
$region0: #{tpu_custom_call.1}
  #allocation0 [shape = 'u32[]', space=smem, size = 0x4, offset = 0x4, fixed_abs, tag = 'smem constant byte address 0x4 - core index']
  #allocation1 [shape = 'u32[144,128]{1,0:T(1,128)}', space=vmem, size = 0x12000, scoped, tag = 'internal scratch']
  %s0 = inlined_call_operand.hbm [shape: f32[16,16], index: 0, kind: input, shape index: {}]
  %s1 = inlined_call_operand.hbm [shape: f32[16,384], index: 1, kind: input, shape index: {}]
  %s2 = inlined_call_operand.vmem [shape: f32[1,384], index: 2, kind: input, shape index: {}]
  %s3 = inlined_call_operand.hbm [shape: f32[16,128], index: 3, kind: output, shape index: {0}]
  %s4 = inlined_call_operand.hbm [shape: f32[16,128], index: 4, kind: output, shape index: {1}]
  %s5 = inlined_call_operand.hbm [shape: f32[16,128], index: 5, kind: output, shape index: {2}]
  %6 = xla_tuple %s3, %s4, %s5
  %s7 = sld [smem:[#allocation0]]
  $region69: #{tpu_custom_call.1} parent=0
    _
  %s9 = ssub.s32 1, %s7
  %s10 = scalar_select 0, %s9, %s7
  $region1: #{tpu_custom_call.1} parent=0
    #allocation2 [shape = 'u8[8192]{0}', space=vmem, size = 0x2000, scoped, tag = 'input window, operand 0']
    #allocation3 [shape = 's32[2]{0}', space=sflag, size = 0x8, scoped, tag = 'scoped memory for tpu_custom_call.1']
    #allocation4 [shape = 's32[2]{0}', space=sflag, size = 0x8, scoped, tag = 'scoped memory for tpu_custom_call.1']
    #allocation5 [shape = 'u8[24576]{0}', space=vmem, size = 0x6000, scoped, tag = 'input window, operand 1, single buffered']
    #allocation6 [shape = 's32[1]{0}', space=sflag, size = 0x4, scoped, tag = 'scoped memory for tpu_custom_call.1']
    #allocation7 [shape = 'u8[8192]{0}', space=vmem, size = 0x2000, scoped, tag = 'output window, operand 0']
    #allocation8 [shape = 'u8[8192]{0}', space=vmem, size = 0x2000, scoped, tag = 'output window, operand 1']
    #allocation9 [shape = 's32[2]{0}', space=sflag, size = 0x8, scoped, tag = 'scoped memory for tpu_custom_call.1']
    #allocation10 [shape = 'u8[8192]{0}', space=vmem, size = 0x2000, scoped, tag = 'output window, operand 2']
    %11 = vsyncpa [#allocation3], 0
    %s12 = scalar_lea.sflag [#allocation3], 1
    %13 = vsyncpa %s12, 0
    %14 = vsyncpa [#allocation6], 0
    %15 = vsyncpa [#allocation4], 0
    %s16 = scalar_lea.sflag [#allocation4], 1
    %17 = vsyncpa %s16, 0
    %18 = vsyncpa [#allocation9], 0
    %s19 = scalar_lea.sflag [#allocation9], 1
    %20 = vsyncpa %s19, 0
    loop: start=0, step=1, limit=4
    $region2: #{tpu_custom_call.1} parent=1 // loop_pre_header
      _
    $region3: #{tpu_custom_call.1} parent=1 // loop_header
      %s22 = sphi 0, %s26
      %p23 = scmp.ge.s32.totalorder %s22, 4
      %s32 = sphi 0, %s34
      %s35 = sphi 0, %s32
      %s36 = sphi 0, %s35
      %s52 = sphi 0, %s36
      %s56 = sphi 0, %s56
      %s58 = sphi 0, %s56
      %s59 = sphi 0, %s58
      %s73 = sphi 0, %s59
      %s77 = sphi 0, %s77
      %s79 = sphi 0, %s77
      %s80 = sphi 0, %s79
      %s94 = sphi 0, %s80
      %s100 = sphi 0, %s102
      %s103 = sphi 0, %s100
      %s104 = sphi 0, %s103
      %s120 = sphi 0, %s104
      %s126 = sphi 0, %s128
      %s129 = sphi 0, %s126
      %s130 = sphi 0, %s129
      %s146 = sphi 0, %s130
      %s152 = sphi 0, %s154
      %s155 = sphi 0, %s152
      %s156 = sphi 0, %s155
      %s172 = sphi 0, %s156
    $region4: #{tpu_custom_call.1} parent=1 // loop_header_branch
      %25 = sbr.rel (%p23) target = $region8
    $region5: #{tpu_custom_call.1} parent=1 // loop_body
      %s27 = ssub.s32 %s22, 1
      %s28 = ssub.s32 %s22, 2
      %s29 = sadd.s32 %s22, 1
      %s30 = ssub.s32 %s22, %s29
      %p31 = scmp.eq.s32.totalorder %s30, 0
      %s33 = sadd.s32 %s32, 1
      %s34 = scalar_select %p31, %s32, %s33
      %p37 = pneg %p31
      %p38 = scmp.eq.s32.totalorder %s22, 1
      %p39 = por %p37, %p38
      %p40 = scmp.ne.s32.totalorder %s32, %s35
      %p41 = scmp.eq.s32.totalorder %s22, 0
      %p42 = por %p40, %p41
      %p43 = scmp.ne.s32.totalorder %s32, %s35
      %p44 = scmp.eq.s32.totalorder %s27, 1
      %p45 = por %p43, %p44
      %p46 = scmp.ne.s32.totalorder %s35, %s36
      %p47 = scmp.eq.s32.totalorder %s27, 0
      %p48 = por %p46, %p47
      %p49 = scmp.ne.s32.totalorder %s35, %s36
      %p50 = scmp.eq.s32.totalorder %s28, 1
      %p51 = por %p49, %p50
      %p53 = scmp.ne.s32.totalorder %s36, %s52
      %p54 = scmp.eq.s32.totalorder %s28, 0
      %p55 = por %p53, %p54
      %s57 = sadd.s32 %s56, 1
      %p60 = scmp.eq.s32.totalorder %s22, 1
      %p61 = scmp.ne.s32.totalorder %s56, %s58
      %p62 = scmp.eq.s32.totalorder %s22, 0
      %p63 = por %p61, %p62
      %p64 = scmp.ne.s32.totalorder %s56, %s58
      %p65 = scmp.eq.s32.totalorder %s27, 1
      %p66 = por %p64, %p65
      %p67 = scmp.ne.s32.totalorder %s58, %s59
      %p68 = scmp.eq.s32.totalorder %s27, 0
      %p69 = por %p67, %p68
      %p70 = scmp.ne.s32.totalorder %s58, %s59
      %p71 = scmp.eq.s32.totalorder %s28, 1
      %p72 = por %p70, %p71
      %p74 = scmp.ne.s32.totalorder %s59, %s73
      %p75 = scmp.eq.s32.totalorder %s28, 0
      %p76 = por %p74, %p75
      %s78 = sadd.s32 %s77, 1
      %p81 = scmp.eq.s32.totalorder %s22, 1
      %p82 = scmp.ne.s32.totalorder %s77, %s79
      %p83 = scmp.eq.s32.totalorder %s22, 0
      %p84 = por %p82, %p83
      %p85 = scmp.ne.s32.totalorder %s77, %s79
      %p86 = scmp.eq.s32.totalorder %s27, 1
      %p87 = por %p85, %p86
      %p88 = scmp.ne.s32.totalorder %s79, %s80
      %p89 = scmp.eq.s32.totalorder %s27, 0
      %p90 = por %p88, %p89
      %p91 = scmp.ne.s32.totalorder %s79, %s80
      %p92 = scmp.eq.s32.totalorder %s28, 1
      %p93 = por %p91, %p92
      %p95 = scmp.ne.s32.totalorder %s80, %s94
      %p96 = scmp.eq.s32.totalorder %s28, 0
      %p97 = por %p95, %p96
      %s98 = ssub.s32 %s22, %s29
      %p99 = scmp.eq.s32.totalorder %s98, 0
      %s101 = sadd.s32 %s100, 1
      %s102 = scalar_select %p99, %s100, %s101
      %p105 = pneg %p99
      %p106 = scmp.eq.s32.totalorder %s22, 1
      %p107 = por %p105, %p106
      %p108 = scmp.ne.s32.totalorder %s100, %s103
      %p109 = scmp.eq.s32.totalorder %s22, 0
      %p110 = por %p108, %p109
      %p111 = scmp.ne.s32.totalorder %s100, %s103
      %p112 = scmp.eq.s32.totalorder %s27, 1
      %p113 = por %p111, %p112
      %p114 = scmp.ne.s32.totalorder %s103, %s104
      %p115 = scmp.eq.s32.totalorder %s27, 0
      %p116 = por %p114, %p115
      %p117 = scmp.ne.s32.totalorder %s103, %s104
      %p118 = scmp.eq.s32.totalorder %s28, 1
      %p119 = por %p117, %p118
      %p121 = scmp.ne.s32.totalorder %s104, %s120
      %p122 = scmp.eq.s32.totalorder %s28, 0
      %p123 = por %p121, %p122
      %s124 = ssub.s32 %s22, %s29
      %p125 = scmp.eq.s32.totalorder %s124, 0
      %s127 = sadd.s32 %s126, 1
      %s128 = scalar_select %p125, %s126, %s127
      %p131 = pneg %p125
      %p132 = scmp.eq.s32.totalorder %s22, 1
      %p133 = por %p131, %p132
      %p134 = scmp.ne.s32.totalorder %s126, %s129
      %p135 = scmp.eq.s32.totalorder %s22, 0
      %p136 = por %p134, %p135
      %p137 = scmp.ne.s32.totalorder %s126, %s129
      %p138 = scmp.eq.s32.totalorder %s27, 1
      %p139 = por %p137, %p138
      %p140 = scmp.ne.s32.totalorder %s129, %s130
      %p141 = scmp.eq.s32.totalorder %s27, 0
      %p142 = por %p140, %p141
      %p143 = scmp.ne.s32.totalorder %s129, %s130
      %p144 = scmp.eq.s32.totalorder %s28, 1
      %p145 = por %p143, %p144
      %p147 = scmp.ne.s32.totalorder %s130, %s146
      %p148 = scmp.eq.s32.totalorder %s28, 0
      %p149 = por %p147, %p148
      %s150 = ssub.s32 %s22, %s29
      %p151 = scmp.eq.s32.totalorder %s150, 0
      %s153 = sadd.s32 %s152, 1
      %s154 = scalar_select %p151, %s152, %s153
      %p157 = pneg %p151
      %p158 = scmp.eq.s32.totalorder %s22, 1
      %p159 = por %p157, %p158
      %p160 = scmp.ne.s32.totalorder %s152, %s155
      %p161 = scmp.eq.s32.totalorder %s22, 0
      %p162 = por %p160, %p161
      %p163 = scmp.ne.s32.totalorder %s152, %s155
      %p164 = scmp.eq.s32.totalorder %s27, 1
      %p165 = por %p163, %p164
      %p166 = scmp.ne.s32.totalorder %s155, %s156
      %p167 = scmp.eq.s32.totalorder %s27, 0
      %p168 = por %p166, %p167
      %p169 = scmp.ne.s32.totalorder %s155, %s156
      %p170 = scmp.eq.s32.totalorder %s28, 1
      %p171 = por %p169, %p170
      %p173 = scmp.ne.s32.totalorder %s156, %s172
      %p174 = scmp.eq.s32.totalorder %s28, 0
      %p175 = por %p173, %p174
      %p176 = scmp.le.s32.totalorder 1, %s22
      %p177 = scmp.lt.s32.totalorder %s22, 3
      %p178 = pnand %p176, %p177
      %p179 = pneg %p178
      // Predicated region
      $region9: #{tpu_custom_call.1} parent=5 // pred_check
        _
      $region10: #{tpu_custom_call.1} parent=5 // pred_check_branch
        %181 = sbr.rel (%p178) target = $region12
      $region11: #{tpu_custom_call.1} parent=5 // pred_region
        %s182 = ssub.s32 %s22, 1
        // Predicated region
        $region13: #{tpu_custom_call.1} parent=11 // pred_check
          %p183 = pneg %p69
        $region14: #{tpu_custom_call.1} parent=11 // pred_check_branch
          %185 = sbr.rel (%p183) target = $region16
        $region15: #{tpu_custom_call.1} parent=11 // pred_region
          %s187 = ssub.s32 768, 768
          %188 = vsyncadd [#allocation6], %s187
          %s189 = sshll.u32 [#allocation5], 4
          %s190 = int_to_ptr.vmem [resolvable:$true] %s189
          %195 = dma.hbm_to_vmem [thread:$0]  %s1, 768, %s190, [#allocation6], 384, 384, 24
        $region16: #{tpu_custom_call.1} parent=11 // pred_fallthru
          _
        // Predicated region
        $region17: #{tpu_custom_call.1} parent=11 // pred_check
          %p196 = pneg %p90
        $region18: #{tpu_custom_call.1} parent=11 // pred_check_branch
          %198 = sbr.rel (%p196) target = $region20
        $region19: #{tpu_custom_call.1} parent=11 // pred_region
          _
        $region20: #{tpu_custom_call.1} parent=11 // pred_fallthru
          _
      $region12: #{tpu_custom_call.1} parent=5 // pred_fallthru
        _
      %p199 = scmp.lt.s32.totalorder %s22, 2
      // Predicated region
      $region21: #{tpu_custom_call.1} parent=5 // pred_check
        %p200 = pneg %p199
      $region22: #{tpu_custom_call.1} parent=5 // pred_check_branch
        %202 = sbr.rel (%p200) target = $region24
      $region23: #{tpu_custom_call.1} parent=5 // pred_region
        // Predicated region
        $region25: #{tpu_custom_call.1} parent=23 // pred_check
          %p203 = pneg %p42
        $region26: #{tpu_custom_call.1} parent=23 // pred_check_branch
          %205 = sbr.rel (%p203) target = $region28
        $region27: #{tpu_custom_call.1} parent=23 // pred_region
          %s206 = sand.u32 %s32, 1
          %s207 = scalar_lea.sflag [#allocation3], %s206
          %s208 = sand.u32 %s32, 1
          %s209 = smul.addr %s208, 8
          %s210 = scalar_lea.vmem [#allocation2], %s209
          %s212 = ssub.s32 128, 128
          %213 = vsyncadd %s207, %s212
          %s214 = smul.addr %s22, 128
          %s215 = scalar_lea.hbm %s0, %s214
          %s217 = sshll.u32 %s210, 4
          %s218 = int_to_ptr.vmem [resolvable:$true] %s217
          %220 = dma.hbm_to_vmem [thread:$0]  %s215, 128, %s218, %s207
        $region28: #{tpu_custom_call.1} parent=23 // pred_fallthru
          _
      $region24: #{tpu_custom_call.1} parent=5 // pred_fallthru
        _
      %p221 = scmp.le.s32.totalorder 1, %s22
      %p222 = scmp.lt.s32.totalorder %s22, 3
      %p223 = pnand %p221, %p222
      %p224 = pneg %p223
      // Predicated region
      $region29: #{tpu_custom_call.1} parent=5 // pred_check
        _
      $region30: #{tpu_custom_call.1} parent=5 // pred_check_branch
        %226 = sbr.rel (%p223) target = $region32
      $region31: #{tpu_custom_call.1} parent=5 // pred_region
        %s227 = ssub.s32 %s22, 1
        %s228 = sand.u32 %s35, 1
        %s229 = scalar_lea.sflag [#allocation3], %s228
        %s230 = sand.u32 %s35, 1
        %s231 = smul.addr %s230, 8
        %s232 = scalar_lea.vmem [#allocation2], %s231
        // Predicated region
        $region33: #{tpu_custom_call.1} parent=31 // pred_check
          %p233 = pneg %p48
        $region34: #{tpu_custom_call.1} parent=31 // pred_check_branch
          %235 = sbr.rel (%p233) target = $region36
        $region35: #{tpu_custom_call.1} parent=31 // pred_region
          %236 = dma.done %s229, 128
        $region36: #{tpu_custom_call.1} parent=31 // pred_fallthru
          _
        // Predicated region
        $region37: #{tpu_custom_call.1} parent=31 // pred_check
          %p237 = pneg %p69
        $region38: #{tpu_custom_call.1} parent=31 // pred_check_branch
          %239 = sbr.rel (%p237) target = $region40
        $region39: #{tpu_custom_call.1} parent=31 // pred_region
          %240 = dma.done [#allocation6], 768
        $region40: #{tpu_custom_call.1} parent=31 // pred_fallthru
          _
        %s241 = sand.u32 %s35, 1
        %s242 = scalar_lea.sflag [#allocation3], %s241
        %s243 = sand.u32 %s35, 1
        %s244 = smul.addr %s243, 8
        %s245 = scalar_lea.vmem [#allocation2], %s244
        %p246 = pneg %p48
        %p247 = pneg %p45
        %p248 = pneg %p69
        %p249 = pneg %p66
        %p250 = pneg %p90
        %p251 = pneg %p87
        %p252 = pneg %p116
        %p253 = pneg %p113
        %s254 = sand.u32 %s103, 1
        %s255 = scalar_lea.sflag [#allocation4], %s254
        %s256 = sand.u32 %s103, 1
        %s257 = smul.addr %s256, 8
        %s258 = scalar_lea.vmem [#allocation7], %s257
        %p259 = pneg %p142
        %p260 = pneg %p139
        %s261 = sand.u32 %s27, 1
        %s262 = scalar_lea.sflag [#allocation9], %s261
        %s263 = sand.u32 %s129, 1
        %s264 = smul.addr %s263, 8
        %s265 = scalar_lea.vmem [#allocation8], %s264
        %p266 = pneg %p168
        %p267 = pneg %p165
        %s268 = sand.u32 %s27, 1
        %s269 = scalar_lea.sflag [#allocation9], %s268
        %s270 = sand.u32 %s155, 1
        %s271 = smul.addr %s270, 8
        %s272 = scalar_lea.vmem [#allocation10], %s271
        %v273 = vld [vmem:[%s232] sm:$0xff]
        %v274 = vld [vmem:[#allocation5] sm:$0xff]
        %v275 = vld [vmem:[#allocation5 + $0x8] sm:$0xff]
        %v276 = vld [vmem:[#allocation5 + $0x10] sm:$0xff]
        %v277 = vld [vmem:[#allocation5 + $0x18] sm:$0xff]
        %v278 = vld [vmem:[#allocation5 + $0x20] sm:$0xff]
        %v279 = vld [vmem:[#allocation5 + $0x28] sm:$0xff]
        %v280 = vld [vmem:[%s2] sm:$0x7]
        %v282 = vlaneseq
        %v283 = vshrl.u32 %v282, 7
        %v284 = vsub.s32 0, %v283
        %v285 = vrot.slane %v280, %v284
        %v286 = vlaneseq
        %v287 = vshrl.u32 %v286, 7
        %v288 = vsub.s32 1, %v287
        %v289 = vrot.slane %v280, %v288
        %v290 = vlaneseq
        %v291 = vshrl.u32 %v290, 7
        %v292 = vsub.s32 2, %v291
        %v293 = vrot.slane %v280, %v292
        %vm297 = vcmask 130048
        %v299 = vsel %vm297, %v273, 0
        %301 = vmatprep.subr.mxu0 %v275
        %302 = vmatpush1.msra.mxu0 %v274
        %303 = vmatprep.subr.mxu0 %v278
        %304 = vmatpush1.msra.mxu0 %v277
        %305 = vmatprep.subr.mxu0 0.0
        %306 = vmatpush1.msra.mxu0 0.0
        %307 = vmatprep.subr.mxu0 0.0
        %308 = vmatpush1.msra.mxu0 0.0
        %309 = vmatprep.subr.mxu0 0.0
        %310 = vmatpush1.msra.mxu0 0.0
        %311 = vmatprep.subr.mxu0 0.0
        %312 = vmatpush1.msra.mxu0 0.0
        %313 = vmatprep.subr.mxu0 0.0
        %314 = vmatpush1.msra.mxu0 0.0
        %315 = vmatprep.subr.mxu0 0.0
        %316 = vmatpush1.msra.mxu0 0.0
        %317 = vmatprep.subr.mxu0 0.0
        %318 = vmatpush1.msra.mxu0 0.0
        %319 = vmatprep.subr.mxu0 0.0
        %320 = vmatpush1.msra.mxu0 0.0
        %321 = vmatprep.subr.mxu0 0.0
        %322 = vmatpush1.msra.mxu0 0.0
        %323 = vmatprep.subr.mxu0 0.0
        %324 = vmatpush1.msra.mxu0 0.0
        %325 = vmatprep.subr.mxu0 0.0
        %326 = vmatpush1.msra.mxu0 0.0
        %327 = vmatprep.subr.mxu0 0.0
        %328 = vmatpush1.msra.mxu0 0.0
        %329 = vmatprep.subr.mxu0 0.0
        %330 = vmatpush1.msra.mxu0 0.0
        %331 = vmatprep.subr.mxu0 0.0
        %332 = vmatpush1.msra.mxu0 0.0
        %333 = vmatprep.subr.mxu0 0.0
        %334 = vmatpush1.msra.mxu0 0.0
        %335 = vmatprep.subr.mxu0 0.0
        %336 = vmatpush1.msra.mxu0 0.0
        %337 = vmatprep.subr.mxu0 0.0
        %338 = vmatpush1.msra.mxu0 0.0
        %339 = vmatprep.subr.mxu0 0.0
        %340 = vmatpush1.msra.mxu0 0.0
        %341 = vmatprep.subr.mxu0 0.0
        %342 = vmatpush1.msra.mxu0 0.0
        %343 = vmatprep.subr.mxu0 0.0
        %344 = vmatpush1.msra.mxu0 0.0
        %345 = vmatprep.subr.mxu0 0.0
        %346 = vmatpush1.msra.mxu0 0.0
        %347 = vmatprep.subr.mxu0 0.0
        %348 = vmatpush1.msra.mxu0 0.0
        %349 = vmatprep.subr.mxu0 0.0
        %350 = vmatpush1.msra.mxu0 0.0
        %351 = vmatprep.subr.mxu0 0.0
        %352 = vmatpush1.msra.mxu0 0.0
        %353 = vmatprep.subr.mxu0 0.0
        %354 = vmatpush1.msra.mxu0 0.0
        %355 = vmatprep.subr.mxu0 0.0
        %356 = vmatpush1.msra.mxu0 0.0
        %357 = vmatprep.subr.mxu0 0.0
        %358 = vmatpush1.msra.mxu0 0.0
        %359 = vmatprep.subr.mxu0 0.0
        %360 = vmatpush1.msra.mxu0 0.0
        %361 = vmatprep.subr.mxu0 0.0
        %362 = vmatpush1.msra.mxu0 0.0
        %363 = vmatprep.subr.mxu0 0.0
        %364 = vmatpush1.msra.mxu0 0.0
        %365 = vmatprep.mubr.f32.mxu0 0.0
        %366 = vmatmul.mubr.f32.gmra.mrb[0].mxu0 %v299
        %v367 = vpop.f32.mrb[0].mxu0
        %v368 = vadd.f32 %v285, %v367
        %v369 = vpop.f32.mrb[0].mxu0
        %v370 = vadd.f32 %v289, %v369
        %371 = vdwg.mxu0
        %372 = vmatprep.subr.mxu0 0.0
        %373 = vmatpush1.msra.mxu0 %v276
        %374 = vmatprep.subr.mxu0 0.0
        %375 = vmatpush1.msra.mxu0 %v279
        %376 = vmatprep.subr.mxu0 0.0
        %377 = vmatpush1.msra.mxu0 0.0
        %378 = vmatprep.subr.mxu0 0.0
        %379 = vmatpush1.msra.mxu0 0.0
        %380 = vmatprep.subr.mxu0 0.0
        %381 = vmatpush1.msra.mxu0 0.0
        %382 = vmatprep.subr.mxu0 0.0
        %383 = vmatpush1.msra.mxu0 0.0
        %384 = vmatprep.subr.mxu0 0.0
        %385 = vmatpush1.msra.mxu0 0.0
        %386 = vmatprep.subr.mxu0 0.0
        %387 = vmatpush1.msra.mxu0 0.0
        %388 = vmatprep.subr.mxu0 0.0
        %389 = vmatpush1.msra.mxu0 0.0
        %390 = vmatprep.subr.mxu0 0.0
        %391 = vmatpush1.msra.mxu0 0.0
        %392 = vmatprep.subr.mxu0 0.0
        %393 = vmatpush1.msra.mxu0 0.0
        %394 = vmatprep.subr.mxu0 0.0
        %395 = vmatpush1.msra.mxu0 0.0
        %396 = vmatprep.subr.mxu0 0.0
        %397 = vmatpush1.msra.mxu0 0.0
        %398 = vmatprep.subr.mxu0 0.0
        %399 = vmatpush1.msra.mxu0 0.0
        %400 = vmatprep.subr.mxu0 0.0
        %401 = vmatpush1.msra.mxu0 0.0
        %402 = vmatprep.subr.mxu0 0.0
        %403 = vmatpush1.msra.mxu0 0.0
        %404 = vmatprep.subr.mxu0 0.0
        %405 = vmatpush1.msra.mxu0 0.0
        %406 = vmatprep.subr.mxu0 0.0
        %407 = vmatpush1.msra.mxu0 0.0
        %408 = vmatprep.subr.mxu0 0.0
        %409 = vmatpush1.msra.mxu0 0.0
        %410 = vmatprep.subr.mxu0 0.0
        %411 = vmatpush1.msra.mxu0 0.0
        %412 = vmatprep.subr.mxu0 0.0
        %413 = vmatpush1.msra.mxu0 0.0
        %414 = vmatprep.subr.mxu0 0.0
        %415 = vmatpush1.msra.mxu0 0.0
        %416 = vmatprep.subr.mxu0 0.0
        %417 = vmatpush1.msra.mxu0 0.0
        %418 = vmatprep.subr.mxu0 0.0
        %419 = vmatpush1.msra.mxu0 0.0
        %420 = vmatprep.subr.mxu0 0.0
        %421 = vmatpush1.msra.mxu0 0.0
        %422 = vmatprep.subr.mxu0 0.0
        %423 = vmatpush1.msra.mxu0 0.0
        %424 = vmatprep.subr.mxu0 0.0
        %425 = vmatpush1.msra.mxu0 0.0
        %426 = vmatprep.subr.mxu0 0.0
        %427 = vmatpush1.msra.mxu0 0.0
        %428 = vmatprep.subr.mxu0 0.0
        %429 = vmatpush1.msra.mxu0 0.0
        %430 = vmatprep.subr.mxu0 0.0
        %431 = vmatpush1.msra.mxu0 0.0
        %432 = vmatprep.subr.mxu0 0.0
        %433 = vmatpush1.msra.mxu0 0.0
        %434 = vmatprep.subr.mxu0 0.0
        %435 = vmatpush1.msra.mxu0 0.0
        %436 = vmatprep.mubr.f32.mxu0 0.0
        %437 = vmatmul.mubr.f32.gmra.mrb[0].mxu0 %v299
        %v438 = vpop.f32.mrb[0].mxu0
        %v439 = vadd.f32 %v293, %v438
        %v440 = vpop.f32.mrb[0].mxu0
        %441 = vdwg.mxu0
        %442 = vst [vmem:[%s258] sm:$0xff] %v368
        %443 = vst [vmem:[%s265] sm:$0xff] %v370
        %444 = vst [vmem:[%s272] sm:$0xff] %v439
        %s445 = sand.u32 %s103, 1
        %s446 = scalar_lea.sflag [#allocation4], %s445
        %s447 = sand.u32 %s103, 1
        %s448 = smul.addr %s447, 8
        %s449 = scalar_lea.vmem [#allocation7], %s448
        %s450 = sand.u32 %s27, 1
        %s451 = scalar_lea.sflag [#allocation9], %s450
        %s452 = sand.u32 %s129, 1
        %s453 = smul.addr %s452, 8
        %s454 = scalar_lea.vmem [#allocation8], %s453
        %s455 = sand.u32 %s27, 1
        %s456 = scalar_lea.sflag [#allocation9], %s455
        %s457 = sand.u32 %s155, 1
        %s458 = smul.addr %s457, 8
        %s459 = scalar_lea.vmem [#allocation10], %s458
        // Predicated region
        $region41: #{tpu_custom_call.1} parent=31 // pred_check
          %p460 = pneg %p113
        $region42: #{tpu_custom_call.1} parent=31 // pred_check_branch
          %462 = sbr.rel (%p460) target = $region44
        $region43: #{tpu_custom_call.1} parent=31 // pred_region
          %s464 = ssub.s32 128, 128
          %465 = vsyncadd %s446, %s464
          %s466 = smul.addr %s27, 128
          %s467 = scalar_lea.hbm %s3, %s466
          %s469 = sshll.u32 %s449, 4
          %s470 = int_to_ptr.vmem [resolvable:$true] %s469
          %472 = dma.vmem_to_hbm [thread:$0]  %s470, 128, %s467, %s446
        $region44: #{tpu_custom_call.1} parent=31 // pred_fallthru
          _
        // Predicated region
        $region45: #{tpu_custom_call.1} parent=31 // pred_check
          %p473 = pneg %p139
        $region46: #{tpu_custom_call.1} parent=31 // pred_check_branch
          %475 = sbr.rel (%p473) target = $region48
        $region47: #{tpu_custom_call.1} parent=31 // pred_region
          %s477 = ssub.s32 128, 128
          %478 = vsyncadd %s451, %s477
          %s479 = smul.addr %s27, 128
          %s480 = scalar_lea.hbm %s4, %s479
          %s482 = sshll.u32 %s454, 4
          %s483 = int_to_ptr.vmem [resolvable:$true] %s482
          %485 = dma.vmem_to_hbm [thread:$0]  %s483, 128, %s480, %s451
        $region48: #{tpu_custom_call.1} parent=31 // pred_fallthru
          _
        // Predicated region
        $region49: #{tpu_custom_call.1} parent=31 // pred_check
          %p486 = pneg %p165
        $region50: #{tpu_custom_call.1} parent=31 // pred_check_branch
          %488 = sbr.rel (%p486) target = $region52
        $region51: #{tpu_custom_call.1} parent=31 // pred_region
          %s490 = ssub.s32 128, 128
          %491 = vsyncadd %s456, %s490
          %s492 = smul.addr %s27, 128
          %s493 = scalar_lea.hbm %s5, %s492
          %s495 = sshll.u32 %s459, 4
          %s496 = int_to_ptr.vmem [resolvable:$true] %s495
          %498 = dma.vmem_to_hbm [thread:$0]  %s496, 128, %s493, %s456
        $region52: #{tpu_custom_call.1} parent=31 // pred_fallthru
          _
      $region32: #{tpu_custom_call.1} parent=5 // pred_fallthru
        _
      %p499 = scmp.le.s32.totalorder 2, %s22
      // Predicated region
      $region53: #{tpu_custom_call.1} parent=5 // pred_check
        %p500 = pneg %p499
      $region54: #{tpu_custom_call.1} parent=5 // pred_check_branch
        %502 = sbr.rel (%p500) target = $region56
      $region55: #{tpu_custom_call.1} parent=5 // pred_region
        %s503 = ssub.s32 %s22, 2
        // Predicated region
        $region57: #{tpu_custom_call.1} parent=55 // pred_check
          %p504 = pneg %p119
        $region58: #{tpu_custom_call.1} parent=55 // pred_check_branch
          %506 = sbr.rel (%p504) target = $region60
        $region59: #{tpu_custom_call.1} parent=55 // pred_region
          %s507 = sand.u32 %s104, 1
          %s508 = scalar_lea.sflag [#allocation4], %s507
          %s509 = sand.u32 %s104, 1
          %s510 = smul.addr %s509, 8
          %s511 = scalar_lea.vmem [#allocation7], %s510
          %512 = dma.done %s508, 128
        $region60: #{tpu_custom_call.1} parent=55 // pred_fallthru
          _
        // Predicated region
        $region61: #{tpu_custom_call.1} parent=55 // pred_check
          %p513 = pneg %p145
        $region62: #{tpu_custom_call.1} parent=55 // pred_check_branch
          %515 = sbr.rel (%p513) target = $region64
        $region63: #{tpu_custom_call.1} parent=55 // pred_region
          %s516 = sand.u32 %s28, 1
          %s517 = scalar_lea.sflag [#allocation9], %s516
          %s518 = sand.u32 %s130, 1
          %s519 = smul.addr %s518, 8
          %s520 = scalar_lea.vmem [#allocation8], %s519
          %521 = dma.done %s517, 128
        $region64: #{tpu_custom_call.1} parent=55 // pred_fallthru
          _
        // Predicated region
        $region65: #{tpu_custom_call.1} parent=55 // pred_check
          %p522 = pneg %p171
        $region66: #{tpu_custom_call.1} parent=55 // pred_check_branch
          %524 = sbr.rel (%p522) target = $region68
        $region67: #{tpu_custom_call.1} parent=55 // pred_region
          %s525 = sand.u32 %s28, 1
          %s526 = scalar_lea.sflag [#allocation9], %s525
          %s527 = sand.u32 %s156, 1
          %s528 = smul.addr %s527, 8
          %s529 = scalar_lea.vmem [#allocation10], %s528
          %530 = dma.done %s526, 128
        $region68: #{tpu_custom_call.1} parent=55 // pred_fallthru
          _
      $region56: #{tpu_custom_call.1} parent=5 // pred_fallthru
        _
    $region6: #{tpu_custom_call.1} parent=1 // loop_footer
      %s26 = sadd.s32 1, %s22
    $region7: #{tpu_custom_call.1} parent=1 // loop_footer_branch
      %21 = sbr.rel target = $region3
    $region8: #{tpu_custom_call.1} parent=1 // loop_exit
      _
    %531 = vsyncpa [#allocation3], 1
    %s532 = scalar_lea.sflag [#allocation3], 1
    %533 = vsyncpa %s532, 1
    %534 = vsyncpa [#allocation6], 1
    %535 = vsyncpa [#allocation4], 1
    %s536 = scalar_lea.sflag [#allocation4], 1
    %537 = vsyncpa %s536, 1
    %538 = vsyncpa [#allocation9], 1
    %s539 = scalar_lea.sflag [#allocation9], 1
    %540 = vsyncpa %s539, 1

</llo_original>
